<compile_context>
chip_gen: v5e
topology: v5e:2x2
jax: 0.10.0
libtpu: 0.0.40
codegen_flags: <defaults>
</compile_context>

<pallas_src>
import functools

import jax
import jax.numpy as jnp
from jax import lax
from jax.experimental import pallas as pl
from jax.experimental.pallas import tpu as pltpu

ALPHA = 0.25           # focal alpha; gamma = 2 is hard-coded as omp * omp below
LANES = 128
MAX_TILE_ROWS = 2048   # 2048x128 f32 = 1 MiB; x3 inputs x2 buffers = 6 MiB VMEM
MIN_GRID_STEPS = 4     # keep multiple steps for v7x megacore + pipelining


def _gaze_focal_kernel(params_ref, x_ref, t_ref, g_ref, out_ref, *,
                       tile_rows, fold_factor, valid_per_slab, needs_mask):
    """One (1, tile_rows, 128) tile of x/t/g -> one (out_rows, 128) partial sum."""
    scale = params_ref[0]       # weights = offset + g * scale   (SMEM scalars)
    offset = params_ref[1]

    x = x_ref[0].astype(jnp.float32)        # (tile_rows, LANES)
    t = t_ref[0].astype(jnp.float32)
    g = g_ref[0, 0].astype(jnp.float32)     # gray channel, selected by the DMA

    w = g * scale + offset                  # weight_gaze folded to one FMA
    z = x * w

    # Binary-target BCE-with-logits and (1 - p_t) from ONE shared exp:
    #   u = (1 - 2t) * z ;  bce = softplus(u) ;  1 - p_t = sigmoid(u)
    u = (1.0 - 2.0 * t) * z
    e = jnp.exp(-jnp.abs(u))
    bce = jnp.maximum(u, 0.0) + jnp.log1p(e)
    one_minus_pt = jnp.where(u >= 0.0, 1.0, e) * pl.reciprocal(1.0 + e,
                                                               approx=True)
    # ALPHA is folded into the scalar epilogue in the wrapper.
    focal = one_minus_pt * one_minus_pt * bce

    def fold(f):
        # VALU-only fold of the tile's vregs onto one (8, 128) slab; for tiny
        # tiles (tile_rows < 8) the raw tile itself is the partial.
        if fold_factor > 1:
            return f.reshape(fold_factor, 8, LANES).sum(axis=0)
        return f

    if not needs_mask:
        out_ref[0, 0, :, :] = fold(focal)
    else:
        j = pl.program_id(1)
        is_last = j == pl.num_programs(1) - 1

        @pl.when(jnp.logical_not(is_last))
        def _():
            out_ref[0, 0, :, :] = fold(focal)

        # Tail mask (pad / partial-block garbage) only on the last tile.
        @pl.when(is_last)
        def _():
            row = lax.broadcasted_iota(jnp.int32, (tile_rows, LANES), 0)
            lane = lax.broadcasted_iota(jnp.int32, (tile_rows, LANES), 1)
            idx = (j * tile_rows + row) * LANES + lane
            out_ref[0, 0, :, :] = fold(
                jnp.where(idx < valid_per_slab, focal, 0.0))


def _round_up(a, b):
    return ((a + b - 1) // b) * b


def _pick_tile_rows(rows, n_slabs):
    if rows <= 8:
        return rows                                   # full dim (tiny inputs)
    cap = min(MAX_TILE_ROWS, (rows // 8) * 8)
    steps_per_slab = max(1, pl.cdiv(MIN_GRID_STEPS, n_slabs))
    want = _round_up(pl.cdiv(rows, steps_per_slab), 8)
    return max(8, min(cap, want))


@jax.jit
def gaze_weighted_focal_loss(input_nchw, target_nchw, heatmap_nchw):
    """Forward pass of GazeWeightedCrossEntropyLoss. Returns a scalar f32."""
    B, _, H, W = input_nchw.shape
    hw = H * W
    n_total = B * hw

    # Hoisted global reduce on the strided channel view (fused by XLA; nothing
    # materialized) -> two SMEM scalars for the streamed kernel pass.
    gray = heatmap_nchw[:, 0, :, :]
    gmax = jnp.max(gray).astype(jnp.float32)
    gmin = jnp.min(gray).astype(jnp.float32)
    both_zero = jnp.logical_and(gmax == 0.0, gmin == 0.0)
    scale = jnp.where(both_zero, 0.0, 239.0 / (gmax - gmin))
    offset = jnp.where(both_zero, 2.0, 1.0 - gmin * scale)
    params = jnp.stack([scale, offset]).astype(jnp.float32)

    if hw % LANES == 0:
        # Fast path: free reshapes only; the heatmap channel select happens
        # inside the pipelined DMA (index_map pins channel 0) -> zero copies.
        rows = hw // LANES
        n_slabs = B
        x3 = input_nchw.reshape(B, rows, LANES)
        t3 = target_nchw.reshape(B, rows, LANES)
        g4 = heatmap_nchw.reshape(B, heatmap_nchw.shape[1], rows, LANES)
        valid_per_slab = hw
    else:
        # Lane-unfriendly fallback: flatten everything into a single slab.
        # The channel slice / tail pad copies are unavoidable here.
        rows = pl.cdiv(n_total, LANES)
        pad = rows * LANES - n_total
        n_slabs = 1

        def flat(a):
            f = a.reshape(-1)
            if pad:
                f = jnp.pad(f, (0, pad))
            return f.reshape(1, rows, LANES)

        x3 = flat(input_nchw)
        t3 = flat(target_nchw)
        g4 = flat(gray).reshape(1, 1, rows, LANES)
        valid_per_slab = n_total

    tile_rows = _pick_tile_rows(rows, n_slabs)
    grid_j = pl.cdiv(rows, tile_rows)
    needs_mask = valid_per_slab < grid_j * tile_rows * LANES
    fold_factor = tile_rows // 8 if tile_rows % 8 == 0 else 1
    out_rows = 8 if fold_factor > 1 else tile_rows

    kernel = functools.partial(
        _gaze_focal_kernel, tile_rows=tile_rows, fold_factor=fold_factor,
        valid_per_slab=valid_per_slab, needs_mask=needs_mask)

    data_spec = pl.BlockSpec((1, tile_rows, LANES), lambda b, j: (b, j, 0))
    heat_spec = pl.BlockSpec((1, 1, tile_rows, LANES),
                             lambda b, j: (b, 0, j, 0))   # channel pinned to 0
    out_spec = pl.BlockSpec((1, 1, out_rows, LANES), lambda b, j: (b, j, 0, 0))

    partials = pl.pallas_call(
        kernel,
        out_shape=jax.ShapeDtypeStruct((n_slabs, grid_j, out_rows, LANES),
                                       jnp.float32),
        grid=(n_slabs, grid_j),
        in_specs=[
            pl.BlockSpec(memory_space=pltpu.MemorySpace.SMEM),  # [scale, offset]
            data_spec, data_spec, heat_spec,
        ],
        out_specs=out_spec,
        compiler_params=pltpu.CompilerParams(
            dimension_semantics=("parallel", "parallel")),
    )(params, x3, t3, g4)

    # ALPHA and 1/N folded into a single scalar epilogue.
    return jnp.sum(partials) * jnp.float32(ALPHA / n_total)


if __name__ == "__main__":
    key = jax.random.PRNGKey(0)
    k1, k2, k3, k4, k5, k6 = jax.random.split(key, 6)

    def ref(inp, tgt, heat):
        x = inp[:, 0]
        t = tgt[:, 0]
        g = heat[:, 0]
        gmax, gmin = jnp.max(g), jnp.min(g)
        both_zero = jnp.logical_and(gmax == 0.0, gmin == 0.0)
        w = jnp.where(both_zero,
                      jnp.full_like(g, 2.0),
                      1.0 + (g - gmin) * (239.0 / (gmax - gmin)))
        z = x * w
        bce = jnp.maximum(z, 0.0) - z * t + jnp.log1p(jnp.exp(-jnp.abs(z)))
        pt = jnp.exp(-bce)
        return jnp.mean(ALPHA * (1.0 - pt) ** 2 * bce)

    def check(inp, tgt, heat, name):
        out = gaze_weighted_focal_loss(inp, tgt, heat)
        jax.block_until_ready(out)
        expect = ref(inp, tgt, heat)
        # rtol accommodates pl.reciprocal(..., approx=True) inside the kernel.
        assert jnp.allclose(out, expect, rtol=1e-2, atol=1e-4), (name, out, expect)

    B, C_heat, H, W = 2, 3, 16, 16

    # Case 1: lane-friendly spatial size (H*W % 128 == 0), random heatmap.
    inp = jax.random.normal(k1, (B, 1, H, W), dtype=jnp.float32)
    tgt = (jax.random.uniform(k2, (B, 1, H, W)) > 0.5).astype(jnp.float32)
    heat = jax.random.uniform(k3, (B, C_heat, H, W), dtype=jnp.float32)
    check(inp, tgt, heat, "lane_friendly")

    # Case 2: all-zero heatmap (weights == 2 branch).
    check(inp, tgt, jnp.zeros_like(heat), "zero_heatmap")

    # Case 3: lane-unfriendly spatial size (fallback path + pl.when tail mask).
    H2 = W2 = 12
    inp2 = jax.random.normal(k4, (B, 1, H2, W2), dtype=jnp.float32)
    tgt2 = (jax.random.uniform(k5, (B, 1, H2, W2)) > 0.5).astype(jnp.float32)
    heat2 = jax.random.uniform(k6, (B, C_heat, H2, W2), dtype=jnp.float32)
    check(inp2, tgt2, heat2, "lane_unfriendly")

    print("KERNEL_OK")
</pallas_src>

<mosaic_0001>
module attributes {stable_mosaic.version = 11 : i64} {
  func.func @_gaze_focal_kernel(%arg0: i32, %arg1: i32, %arg2: memref<2xf32, #tpu.memory_space<smem>>, %arg3: memref<1x2x128xf32, #tpu.memory_space<vmem>>, %arg4: memref<1x2x128xf32, #tpu.memory_space<vmem>>, %arg5: memref<1x1x2x128xf32, #tpu.memory_space<vmem>>, %arg6: memref<1x1x2x128xf32, #tpu.memory_space<vmem>>) attributes {dimension_semantics = [#tpu.dimension_semantics<parallel>, #tpu.dimension_semantics<parallel>], iteration_bounds = array<i64: 2, 1>, scalar_prefetch = 0 : i64, scratch_operands = 0 : i64, tpu.core_type = #tpu.core_type<tc>, window_params = [{transform_indices = @transform_0, window_bounds = array<i64: 2>}, {transform_indices = @transform_1, window_bounds = array<i64: 1, 2, 128>}, {transform_indices = @transform_2, window_bounds = array<i64: 1, 2, 128>}, {transform_indices = @transform_3, window_bounds = array<i64: 1, 1, 2, 128>}, {transform_indices = @transform_4, window_bounds = array<i64: 1, 1, 2, 128>}]} {
    %c0 = arith.constant 0 : index
    %0 = memref.load %arg2[%c0] : memref<2xf32, #tpu.memory_space<smem>>
    %c1 = arith.constant 1 : index
    %1 = memref.load %arg2[%c1] : memref<2xf32, #tpu.memory_space<smem>>
    %c0_0 = arith.constant 0 : index
    %c0_1 = arith.constant 0 : index
    %c0_2 = arith.constant 0 : index
    %2 = vector.load %arg3[%c0_0, %c0_1, %c0_2] : memref<1x2x128xf32, #tpu.memory_space<vmem>>, vector<1x2x128xf32>
    %3 = vector.shape_cast %2 : vector<1x2x128xf32> to vector<2x128xf32>
    %c0_3 = arith.constant 0 : index
    %c0_4 = arith.constant 0 : index
    %c0_5 = arith.constant 0 : index
    %4 = vector.load %arg4[%c0_3, %c0_4, %c0_5] : memref<1x2x128xf32, #tpu.memory_space<vmem>>, vector<1x2x128xf32>
    %5 = vector.shape_cast %4 : vector<1x2x128xf32> to vector<2x128xf32>
    %c0_6 = arith.constant 0 : index
    %c0_7 = arith.constant 0 : index
    %c0_8 = arith.constant 0 : index
    %c0_9 = arith.constant 0 : index
    %6 = vector.load %arg5[%c0_6, %c0_7, %c0_8, %c0_9] : memref<1x1x2x128xf32, #tpu.memory_space<vmem>>, vector<1x1x2x128xf32>
    %7 = vector.shape_cast %6 : vector<1x1x2x128xf32> to vector<2x128xf32>
    %8 = vector.broadcast %0 : f32 to vector<2x128xf32>
    %9 = arith.mulf %7, %8 : vector<2x128xf32>
    %10 = vector.broadcast %1 : f32 to vector<2x128xf32>
    %11 = arith.addf %9, %10 : vector<2x128xf32>
    %12 = arith.mulf %3, %11 : vector<2x128xf32>
    %cst = arith.constant 2.000000e+00 : f32
    %13 = vector.broadcast %cst : f32 to vector<2x128xf32>
    %14 = arith.mulf %13, %5 : vector<2x128xf32>
    %cst_10 = arith.constant 1.000000e+00 : f32
    %15 = vector.broadcast %cst_10 : f32 to vector<2x128xf32>
    %16 = arith.subf %15, %14 : vector<2x128xf32>
    %17 = arith.mulf %16, %12 : vector<2x128xf32>
    %18 = math.absf %17 : vector<2x128xf32>
    %cst_11 = arith.constant 0.000000e+00 : f32
    %19 = vector.broadcast %cst_11 : f32 to vector<2x128xf32>
    %20 = arith.subf %19, %18 : vector<2x128xf32>
    %21 = math.exp %20 : vector<2x128xf32>
    %cst_12 = arith.constant 0.000000e+00 : f32
    %22 = vector.broadcast %cst_12 : f32 to vector<2x128xf32>
    %23 = arith.maximumf %17, %22 : vector<2x128xf32>
    %24 = math.log1p %21 : vector<2x128xf32>
    %25 = arith.addf %23, %24 : vector<2x128xf32>
    %cst_13 = arith.constant 0.000000e+00 : f32
    %26 = vector.broadcast %cst_13 : f32 to vector<2x128xf32>
    %27 = arith.cmpf oge, %17, %26 : vector<2x128xf32>
    %cst_14 = arith.constant 1.000000e+00 : f32
    %28 = vector.broadcast %cst_14 : f32 to vector<2x128xf32>
    %29 = arith.select %27, %28, %21 : vector<2x128xi1>, vector<2x128xf32>
    %cst_15 = arith.constant 1.000000e+00 : f32
    %30 = vector.broadcast %cst_15 : f32 to vector<2x128xf32>
    %31 = arith.addf %30, %21 : vector<2x128xf32>
    %32 = tpu.reciprocal %31 {approx = true} : vector<2x128xf32> -> vector<2x128xf32>
    %33 = arith.mulf %29, %32 : vector<2x128xf32>
    %34 = arith.mulf %33, %33 : vector<2x128xf32>
    %35 = arith.mulf %34, %25 : vector<2x128xf32>
    %c0_16 = arith.constant 0 : index
    %c0_17 = arith.constant 0 : index
    %c0_18 = arith.constant 0 : index
    %c0_19 = arith.constant 0 : index
    %36 = vector.load %arg6[%c0_16, %c0_17, %c0_18, %c0_19] : memref<1x1x2x128xf32, #tpu.memory_space<vmem>>, vector<1x1x2x128xf32>
    %37 = vector.shape_cast %36 : vector<1x1x2x128xf32> to vector<2x128xf32>
    %38 = vector.shape_cast %35 : vector<2x128xf32> to vector<1x1x2x128xf32>
    tpu.vector_store %arg6[%c0_16, %c0_17, %c0_18, %c0_19], %38 {strides = array<i32>} : memref<1x1x2x128xf32, #tpu.memory_space<vmem>>, vector<1x1x2x128xf32>,
    return
  }
  func.func @transform_0(%arg0: i32, %arg1: i32) -> i32 {
    %c0_i32 = arith.constant 0 : i32
    %c0_i32_0 = arith.constant 0 : i32
    return %c0_i32 : i32
  }
  func.func @transform_1(%arg0: i32, %arg1: i32) -> (i32, i32, i32) {
    %c0_i32 = arith.constant 0 : i32
    %c0_i32_0 = arith.constant 0 : i32
    return %arg0, %arg1, %c0_i32 : i32, i32, i32
  }
  func.func @transform_2(%arg0: i32, %arg1: i32) -> (i32, i32, i32) {
    %c0_i32 = arith.constant 0 : i32
    %c0_i32_0 = arith.constant 0 : i32
    return %arg0, %arg1, %c0_i32 : i32, i32, i32
  }
  func.func @transform_3(%arg0: i32, %arg1: i32) -> (i32, i32, i32, i32) {
    %c0_i32 = arith.constant 0 : i32
    %c0_i32_0 = arith.constant 0 : i32
    %c0_i32_1 = arith.constant 0 : i32
    return %arg0, %c0_i32, %arg1, %c0_i32_0 : i32, i32, i32, i32
  }
  func.func @transform_4(%arg0: i32, %arg1: i32) -> (i32, i32, i32, i32) {
    %c0_i32 = arith.constant 0 : i32
    %c0_i32_0 = arith.constant 0 : i32
    %c0_i32_1 = arith.constant 0 : i32
    return %arg0, %arg1, %c0_i32, %c0_i32_0 : i32, i32, i32, i32
  }
}

</mosaic_0001>

<llo_original>
// kernel: gaze_weighted_focal_loss.1
$region0: #{gaze_weighted_focal_loss.1}
  #allocation0 [shape = 'u32[]', space=smem, size = 0x4, offset = 0x4, fixed_abs, tag = 'smem constant byte address 0x4 - core index']
  #allocation1 [shape = 'u32[72,128]{1,0:T(1,128)}', space=vmem, size = 0x9000, scoped, tag = 'internal scratch']
  %s0 = inlined_call_operand.vmem [shape: f32[2], index: 0, kind: input, shape index: {}]
  %s1 = inlined_call_operand.vmem [shape: f32[2,2,128], index: 1, kind: input, shape index: {}]
  %s2 = inlined_call_operand.vmem [shape: f32[2,2,128], index: 2, kind: input, shape index: {}]
  %s3 = inlined_call_operand.vmem [shape: f32[2,3,2,128], index: 3, kind: input, shape index: {}]
  %s4 = inlined_call_operand.vmem [shape: f32[2,1,2,128], index: 4, kind: output, shape index: {}]
  %s5 = sld [smem:[#allocation0]]
  $region53: #{gaze_weighted_focal_loss.1} parent=0
    _
  %s7 = ssub.s32 1, %s5
  %s8 = scalar_select 0, %s7, %s5
  $region1: #{gaze_weighted_focal_loss.1} parent=0
    #allocation2 [shape = 'u8[512]{0}', space=smem, size = 0x200, scoped, tag = 'input window, operand 0, single buffered']
    #allocation3 [shape = 's32[2]{0}', space=sflag, size = 0x8, scoped, tag = 'scoped memory for gaze_weighted_focal_loss.1']
    %9 = vsyncpa [#allocation3], 0
    loop: start=0, step=1, limit=4
    $region2: #{gaze_weighted_focal_loss.1} parent=1 // loop_pre_header
      _
    $region3: #{gaze_weighted_focal_loss.1} parent=1 // loop_header
      %s11 = sphi 0, %s15
      %p12 = scmp.ge.s32.totalorder %s11, 4
      %s18 = sphi 0, %s30
      %s19 = sphi 0, %s26
      %s20 = sphi 0, %s18
      %s21 = sphi 0, %s19
      %s22 = sphi 0, %s20
      %s23 = sphi 0, %s21
      %s31 = sphi 0, %s31
      %s33 = sphi 0, %s31
      %s34 = sphi 0, %s33
      %s48 = sphi 0, %s34
      %s56 = sphi 0, %s58
      %s59 = sphi 0, %s56
      %s60 = sphi 0, %s59
      %s76 = sphi 0, %s60
      %s84 = sphi 0, %s86
      %s87 = sphi 0, %s84
      %s88 = sphi 0, %s87
      %s104 = sphi 0, %s88
      %s112 = sphi 0, %s114
      %s115 = sphi 0, %s112
      %s116 = sphi 0, %s115
      %s132 = sphi 0, %s116
      %s140 = sphi 0, %s142
      %s143 = sphi 0, %s140
      %s144 = sphi 0, %s143
      %s160 = sphi 0, %s144
    $region4: #{gaze_weighted_focal_loss.1} parent=1 // loop_header_branch
      %14 = sbr.rel (%p12) target = $region8
    $region5: #{gaze_weighted_focal_loss.1} parent=1 // loop_body
      %s16 = ssub.s32 %s11, 1
      %s17 = ssub.s32 %s11, 2
      %s24 = sadd.s32 1, %s19
      %p25 = scmp.ge.s32.totalorder %s24, 1
      %s26 = scalar_select %p25, 0, %s24
      %s27 = sadd.s32 1, %s18
      %s28 = scalar_select %p25, %s27, %s18
      %p29 = scmp.ge.s32.totalorder %s28, 2
      %s30 = scalar_select %p29, 0, %s28
      %s32 = sadd.s32 %s31, 1
      %p35 = scmp.eq.s32.totalorder %s11, 1
      %p36 = scmp.ne.s32.totalorder %s31, %s33
      %p37 = scmp.eq.s32.totalorder %s11, 0
      %p38 = por %p36, %p37
      %p39 = scmp.ne.s32.totalorder %s31, %s33
      %p40 = scmp.eq.s32.totalorder %s16, 1
      %p41 = por %p39, %p40
      %p42 = scmp.ne.s32.totalorder %s33, %s34
      %p43 = scmp.eq.s32.totalorder %s16, 0
      %p44 = por %p42, %p43
      %p45 = scmp.ne.s32.totalorder %s33, %s34
      %p46 = scmp.eq.s32.totalorder %s17, 1
      %p47 = por %p45, %p46
      %p49 = scmp.ne.s32.totalorder %s34, %s48
      %p50 = scmp.eq.s32.totalorder %s17, 0
      %p51 = por %p49, %p50
      %s52 = ssub.s32 %s18, %s30
      %s53 = ssub.s32 %s19, %s26
      %s54 = sor.u32 %s52, %s53
      %p55 = scmp.eq.s32.totalorder %s54, 0
      %s57 = sadd.s32 %s56, 1
      %s58 = scalar_select %p55, %s56, %s57
      %p61 = pneg %p55
      %p62 = scmp.eq.s32.totalorder %s11, 1
      %p63 = por %p61, %p62
      %p64 = scmp.ne.s32.totalorder %s56, %s59
      %p65 = scmp.eq.s32.totalorder %s11, 0
      %p66 = por %p64, %p65
      %p67 = scmp.ne.s32.totalorder %s56, %s59
      %p68 = scmp.eq.s32.totalorder %s16, 1
      %p69 = por %p67, %p68
      %p70 = scmp.ne.s32.totalorder %s59, %s60
      %p71 = scmp.eq.s32.totalorder %s16, 0
      %p72 = por %p70, %p71
      %p73 = scmp.ne.s32.totalorder %s59, %s60
      %p74 = scmp.eq.s32.totalorder %s17, 1
      %p75 = por %p73, %p74
      %p77 = scmp.ne.s32.totalorder %s60, %s76
      %p78 = scmp.eq.s32.totalorder %s17, 0
      %p79 = por %p77, %p78
      %s80 = ssub.s32 %s18, %s30
      %s81 = ssub.s32 %s19, %s26
      %s82 = sor.u32 %s80, %s81
      %p83 = scmp.eq.s32.totalorder %s82, 0
      %s85 = sadd.s32 %s84, 1
      %s86 = scalar_select %p83, %s84, %s85
      %p89 = pneg %p83
      %p90 = scmp.eq.s32.totalorder %s11, 1
      %p91 = por %p89, %p90
      %p92 = scmp.ne.s32.totalorder %s84, %s87
      %p93 = scmp.eq.s32.totalorder %s11, 0
      %p94 = por %p92, %p93
      %p95 = scmp.ne.s32.totalorder %s84, %s87
      %p96 = scmp.eq.s32.totalorder %s16, 1
      %p97 = por %p95, %p96
      %p98 = scmp.ne.s32.totalorder %s87, %s88
      %p99 = scmp.eq.s32.totalorder %s16, 0
      %p100 = por %p98, %p99
      %p101 = scmp.ne.s32.totalorder %s87, %s88
      %p102 = scmp.eq.s32.totalorder %s17, 1
      %p103 = por %p101, %p102
      %p105 = scmp.ne.s32.totalorder %s88, %s104
      %p106 = scmp.eq.s32.totalorder %s17, 0
      %p107 = por %p105, %p106
      %s108 = ssub.s32 %s18, %s30
      %s109 = ssub.s32 %s19, %s26
      %s110 = sor.u32 %s108, %s109
      %p111 = scmp.eq.s32.totalorder %s110, 0
      %s113 = sadd.s32 %s112, 1
      %s114 = scalar_select %p111, %s112, %s113
      %p117 = pneg %p111
      %p118 = scmp.eq.s32.totalorder %s11, 1
      %p119 = por %p117, %p118
      %p120 = scmp.ne.s32.totalorder %s112, %s115
      %p121 = scmp.eq.s32.totalorder %s11, 0
      %p122 = por %p120, %p121
      %p123 = scmp.ne.s32.totalorder %s112, %s115
      %p124 = scmp.eq.s32.totalorder %s16, 1
      %p125 = por %p123, %p124
      %p126 = scmp.ne.s32.totalorder %s115, %s116
      %p127 = scmp.eq.s32.totalorder %s16, 0
      %p128 = por %p126, %p127
      %p129 = scmp.ne.s32.totalorder %s115, %s116
      %p130 = scmp.eq.s32.totalorder %s17, 1
      %p131 = por %p129, %p130
      %p133 = scmp.ne.s32.totalorder %s116, %s132
      %p134 = scmp.eq.s32.totalorder %s17, 0
      %p135 = por %p133, %p134
      %s136 = ssub.s32 %s18, %s30
      %s137 = ssub.s32 %s19, %s26
      %s138 = sor.u32 %s136, %s137
      %p139 = scmp.eq.s32.totalorder %s138, 0
      %s141 = sadd.s32 %s140, 1
      %s142 = scalar_select %p139, %s140, %s141
      %p145 = pneg %p139
      %p146 = scmp.eq.s32.totalorder %s11, 1
      %p147 = por %p145, %p146
      %p148 = scmp.ne.s32.totalorder %s140, %s143
      %p149 = scmp.eq.s32.totalorder %s11, 0
      %p150 = por %p148, %p149
      %p151 = scmp.ne.s32.totalorder %s140, %s143
      %p152 = scmp.eq.s32.totalorder %s16, 1
      %p153 = por %p151, %p152
      %p154 = scmp.ne.s32.totalorder %s143, %s144
      %p155 = scmp.eq.s32.totalorder %s16, 0
      %p156 = por %p154, %p155
      %p157 = scmp.ne.s32.totalorder %s143, %s144
      %p158 = scmp.eq.s32.totalorder %s17, 1
      %p159 = por %p157, %p158
      %p161 = scmp.ne.s32.totalorder %s144, %s160
      %p162 = scmp.eq.s32.totalorder %s17, 0
      %p163 = por %p161, %p162
      %p164 = scmp.le.s32.totalorder 1, %s11
      %p165 = scmp.lt.s32.totalorder %s11, 3
      %p166 = pnand %p164, %p165
      %p167 = pneg %p166
      // Predicated region
      $region9: #{gaze_weighted_focal_loss.1} parent=5 // pred_check
        _
      $region10: #{gaze_weighted_focal_loss.1} parent=5 // pred_check_branch
        %169 = sbr.rel (%p166) target = $region12
      $region11: #{gaze_weighted_focal_loss.1} parent=5 // pred_region
        %s170 = ssub.s32 %s11, 1
        // Predicated region
        $region13: #{gaze_weighted_focal_loss.1} parent=11 // pred_check
          %p171 = pneg %p44
        $region14: #{gaze_weighted_focal_loss.1} parent=11 // pred_check_branch
          %173 = sbr.rel (%p171) target = $region16
        $region15: #{gaze_weighted_focal_loss.1} parent=11 // pred_region
          %175 = vsyncadd [#allocation3], 0
          %s177 = sshll.u32 %s0, 4
          %s178 = int_to_ptr.vmem [resolvable:$true] %s177
          %180 = dma.vmem_to_smem %s178, 16, [#allocation2], [#allocation3]
        $region16: #{gaze_weighted_focal_loss.1} parent=11 // pred_fallthru
          _
      $region12: #{gaze_weighted_focal_loss.1} parent=5 // pred_fallthru
        _
      %p181 = scmp.lt.s32.totalorder %s11, 2
      // Predicated region
      $region17: #{gaze_weighted_focal_loss.1} parent=5 // pred_check
        %p182 = pneg %p181
      $region18: #{gaze_weighted_focal_loss.1} parent=5 // pred_check_branch
        %184 = sbr.rel (%p182) target = $region20
      $region19: #{gaze_weighted_focal_loss.1} parent=5 // pred_region
        // Predicated region
        $region21: #{gaze_weighted_focal_loss.1} parent=19 // pred_check
          %p185 = pneg %p66
        $region22: #{gaze_weighted_focal_loss.1} parent=19 // pred_check_branch
          %187 = sbr.rel (%p185) target = $region24
        $region23: #{gaze_weighted_focal_loss.1} parent=19 // pred_region
          %p188 = scmp.lt.s32.totalorder %s18, 1
          %s189 = scalar_select %p188, %s18, 1
          %p190 = scmp.lt.s32.totalorder %s19, 0
          %s191 = scalar_select %p190, %s19, 0
          %s192 = sadd.s32 %s191, %s189
          %s193 = smul.addr %s192, 2
          %s194 = scalar_lea.vmem %s1, %s193
        $region24: #{gaze_weighted_focal_loss.1} parent=19 // pred_fallthru
          _
        // Predicated region
        $region25: #{gaze_weighted_focal_loss.1} parent=19 // pred_check
          %p195 = pneg %p94
        $region26: #{gaze_weighted_focal_loss.1} parent=19 // pred_check_branch
          %197 = sbr.rel (%p195) target = $region28
        $region27: #{gaze_weighted_focal_loss.1} parent=19 // pred_region
          %p198 = scmp.lt.s32.totalorder %s18, 1
          %s199 = scalar_select %p198, %s18, 1
          %p200 = scmp.lt.s32.totalorder %s19, 0
          %s201 = scalar_select %p200, %s19, 0
          %s202 = sadd.s32 %s201, %s199
          %s203 = smul.addr %s202, 2
          %s204 = scalar_lea.vmem %s2, %s203
        $region28: #{gaze_weighted_focal_loss.1} parent=19 // pred_fallthru
          _
        // Predicated region
        $region29: #{gaze_weighted_focal_loss.1} parent=19 // pred_check
          %p205 = pneg %p122
        $region30: #{gaze_weighted_focal_loss.1} parent=19 // pred_check_branch
          %207 = sbr.rel (%p205) target = $region32
        $region31: #{gaze_weighted_focal_loss.1} parent=19 // pred_region
          %p208 = scmp.lt.s32.totalorder %s18, 1
          %s209 = scalar_select %p208, %s18, 1
          %p210 = scmp.lt.s32.totalorder %s19, 0
          %s211 = scalar_select %p210, %s19, 0
          %s212 = smul.addr %s209, 3
          %s213 = sadd.s32 %s211, %s212
          %s214 = smul.addr %s213, 2
          %s215 = scalar_lea.vmem %s3, %s214
        $region32: #{gaze_weighted_focal_loss.1} parent=19 // pred_fallthru
          _
      $region20: #{gaze_weighted_focal_loss.1} parent=5 // pred_fallthru
        _
      %p216 = scmp.le.s32.totalorder 1, %s11
      %p217 = scmp.lt.s32.totalorder %s11, 3
      %p218 = pnand %p216, %p217
      %p219 = pneg %p218
      // Predicated region
      $region33: #{gaze_weighted_focal_loss.1} parent=5 // pred_check
        _
      $region34: #{gaze_weighted_focal_loss.1} parent=5 // pred_check_branch
        %221 = sbr.rel (%p218) target = $region36
      $region35: #{gaze_weighted_focal_loss.1} parent=5 // pred_region
        %s222 = ssub.s32 %s11, 1
        // Predicated region
        $region37: #{gaze_weighted_focal_loss.1} parent=35 // pred_check
          %p223 = pneg %p44
        $region38: #{gaze_weighted_focal_loss.1} parent=35 // pred_check_branch
          %225 = sbr.rel (%p223) target = $region40
        $region39: #{gaze_weighted_focal_loss.1} parent=35 // pred_region
          %227 = dma.done [#allocation3], 16
        $region40: #{gaze_weighted_focal_loss.1} parent=35 // pred_fallthru
          _
        %228 = sfence
        %p229 = pneg %p44
        %p230 = pneg %p41
        %p231 = scmp.lt.s32.totalorder %s20, 1
        %s232 = scalar_select %p231, %s20, 1
        %p233 = scmp.lt.s32.totalorder %s21, 0
        %s234 = scalar_select %p233, %s21, 0
        %s235 = sadd.s32 %s234, %s232
        %s236 = smul.addr %s235, 2
        %s237 = scalar_lea.vmem %s1, %s236
        %p238 = pneg %p72
        %p239 = pneg %p69
        %p240 = scmp.lt.s32.totalorder %s20, 1
        %s241 = scalar_select %p240, %s20, 1
        %p242 = scmp.lt.s32.totalorder %s21, 0
        %s243 = scalar_select %p242, %s21, 0
        %s244 = sadd.s32 %s243, %s241
        %s245 = smul.addr %s244, 2
        %s246 = scalar_lea.vmem %s2, %s245
        %p247 = pneg %p100
        %p248 = pneg %p97
        %p249 = scmp.lt.s32.totalorder %s20, 1
        %s250 = scalar_select %p249, %s20, 1
        %p251 = scmp.lt.s32.totalorder %s21, 0
        %s252 = scalar_select %p251, %s21, 0
        %s253 = smul.addr %s250, 3
        %s254 = sadd.s32 %s252, %s253
        %s255 = smul.addr %s254, 2
        %s256 = scalar_lea.vmem %s3, %s255
        %p257 = pneg %p128
        %p258 = pneg %p125
        %p259 = pneg %p156
        %p260 = pneg %p153
        %p261 = scmp.lt.s32.totalorder %s20, 1
        %s262 = scalar_select %p261, %s20, 1
        %p263 = scmp.lt.s32.totalorder %s21, 0
        %s264 = scalar_select %p263, %s21, 0
        %s265 = sadd.s32 %s264, %s262
        %s266 = smul.addr %s265, 2
        %s267 = scalar_lea.vmem %s4, %s266
        %p268 = scmp.lt.s32.totalorder %s20, 1
        %s269 = scalar_select %p268, %s20, 1
        %p270 = scmp.lt.s32.totalorder %s21, 0
        %s271 = scalar_select %p270, %s21, 0
        %s272 = sadd.s32 %s271, %s269
        %s273 = smul.addr %s272, 2
        %s274 = scalar_lea.vmem %s1, %s273
        %p275 = scmp.lt.s32.totalorder %s20, 1
        %s276 = scalar_select %p275, %s20, 1
        %p277 = scmp.lt.s32.totalorder %s21, 0
        %s278 = scalar_select %p277, %s21, 0
        %s279 = sadd.s32 %s278, %s276
        %s280 = smul.addr %s279, 2
        %s281 = scalar_lea.vmem %s2, %s280
        %p282 = scmp.lt.s32.totalorder %s20, 1
        %s283 = scalar_select %p282, %s20, 1
        %p284 = scmp.lt.s32.totalorder %s21, 0
        %s285 = scalar_select %p284, %s21, 0
        %s286 = smul.addr %s283, 3
        %s287 = sadd.s32 %s285, %s286
        %s288 = smul.addr %s287, 2
        %s289 = scalar_lea.vmem %s3, %s288
        %p290 = scmp.lt.s32.totalorder %s20, 1
        %s291 = scalar_select %p290, %s20, 1
        %p292 = scmp.lt.s32.totalorder %s21, 0
        %s293 = scalar_select %p292, %s21, 0
        %s294 = sadd.s32 %s293, %s291
        %s295 = smul.addr %s294, 2
        %s296 = scalar_lea.vmem %s4, %s295
        %s297 = sld [smem:[#allocation2]]
        %s298 = sld [smem:[#allocation2 + $0x1]]
        %v299 = vld [vmem:[%s274] sm:$0x3]
        %v300 = vld [vmem:[%s281] sm:$0x3]
        %v301 = vld [vmem:[%s289] sm:$0x3]
        %v302 = vstv %s297
        %v303 = vmul.f32 %v301, %v302
        %v304 = vstv %s298
        %v305 = vadd.f32 %v303, %v304
        %v306 = vmul.f32 %v299, %v305
        %v307 = vmul.f32 %v300, 2.0
        %v308 = vsub.f32 1.0, %v307
        %v309 = vmul.f32 %v308, %v306
        %v310 = vand.u32 2147483647, %v309
        %v311 = vsub.f32 0.0, %v310
        %v312 = vmul.f32 %v311, 1.442695
        %v313 = vpow.pop %v312
        %v314 = vmax.f32 %v309, 0.0
        %v315 = vadd.f32 %v313, 1.0
        %v316 = vlog2.pop %v315
        %v317 = vmul.f32 %v316, 0.6931472
        %v318 = vmul.f32 -0.5, %v313
        %v319 = vadd.f32 %v318, 1.0
        %v320 = vmul.f32 %v319, %v313
        %v321 = vand.u32 2147483647, %v313
        %vm322 = vcmp.lt.f32.partialorder %v321, 0.0004427343
        %v323 = vsel %vm322, %v320, %v317
        %v324 = vadd.f32 %v314, %v323
        %vm325 = vcmp.ge.f32.partialorder %v309, 0.0
        %v326 = vsel %vm325, 1.0, %v313
        %v327 = vadd.f32 %v313, 1.0
        %v328 = vrcp.pop %v327
        %v329 = vmul.f32 %v326, %v328
        %v330 = vmul.f32 %v329, %v329
        %v331 = vmul.f32 %v330, %v324
        %332 = vst [vmem:[%s296] sm:$0x3] %v331
        %p333 = scmp.lt.s32.totalorder %s20, 1
        %s334 = scalar_select %p333, %s20, 1
        %p335 = scmp.lt.s32.totalorder %s21, 0
        %s336 = scalar_select %p335, %s21, 0
        %s337 = sadd.s32 %s336, %s334
        %s338 = smul.addr %s337, 2
        %s339 = scalar_lea.vmem %s4, %s338
        // Predicated region
        $region41: #{gaze_weighted_focal_loss.1} parent=35 // pred_check
          %p340 = pneg %p153
        $region42: #{gaze_weighted_focal_loss.1} parent=35 // pred_check_branch
          %342 = sbr.rel (%p340) target = $region44
        $region43: #{gaze_weighted_focal_loss.1} parent=35 // pred_region
          _
        $region44: #{gaze_weighted_focal_loss.1} parent=35 // pred_fallthru
          _
      $region36: #{gaze_weighted_focal_loss.1} parent=5 // pred_fallthru
        _
      %p343 = scmp.le.s32.totalorder 2, %s11
      // Predicated region
      $region45: #{gaze_weighted_focal_loss.1} parent=5 // pred_check
        %p344 = pneg %p343
      $region46: #{gaze_weighted_focal_loss.1} parent=5 // pred_check_branch
        %346 = sbr.rel (%p344) target = $region48
      $region47: #{gaze_weighted_focal_loss.1} parent=5 // pred_region
        %s347 = ssub.s32 %s11, 2
        // Predicated region
        $region49: #{gaze_weighted_focal_loss.1} parent=47 // pred_check
          %p348 = pneg %p159
        $region50: #{gaze_weighted_focal_loss.1} parent=47 // pred_check_branch
          %350 = sbr.rel (%p348) target = $region52
        $region51: #{gaze_weighted_focal_loss.1} parent=47 // pred_region
          %p351 = scmp.lt.s32.totalorder %s22, 1
          %s352 = scalar_select %p351, %s22, 1
          %p353 = scmp.lt.s32.totalorder %s23, 0
          %s354 = scalar_select %p353, %s23, 0
          %s355 = sadd.s32 %s354, %s352
          %s356 = smul.addr %s355, 2
          %s357 = scalar_lea.vmem %s4, %s356
        $region52: #{gaze_weighted_focal_loss.1} parent=47 // pred_fallthru
          _
      $region48: #{gaze_weighted_focal_loss.1} parent=5 // pred_fallthru
        _
    $region6: #{gaze_weighted_focal_loss.1} parent=1 // loop_footer
      %s15 = sadd.s32 1, %s11
    $region7: #{gaze_weighted_focal_loss.1} parent=1 // loop_footer_branch
      %10 = sbr.rel target = $region3
    $region8: #{gaze_weighted_focal_loss.1} parent=1 // loop_exit
      _
    %358 = vsyncpa [#allocation3], 1
    %s359 = scalar_lea.sflag [#allocation3], 1
    %360 = vsyncpa %s359, 1

</llo_original>
